<compile_context>
chip_gen: v5e
topology: v5e:2x2
jax: 0.10.0
libtpu: 0.0.40
codegen_flags: <defaults>
</compile_context>

<pallas_src>
import functools

import jax
import jax.numpy as jnp
from jax.experimental import pallas as pl
from jax.experimental.pallas import tpu as pltpu


# ---------------------------------------------------------------------------
# In-kernel helpers
# ---------------------------------------------------------------------------

def _normalize_rows_bf16(x_f32):
    """L2-normalize rows in f32 (eps matches torch F.normalize) then cast bf16."""
    inv = jax.lax.rsqrt(
        jnp.maximum(jnp.sum(x_f32 * x_f32, axis=-1, keepdims=True), 1e-24))
    return (x_f32 * inv).astype(jnp.bfloat16)


def _topk_sum(pos_sim, k, num_classes):
    """Sum of the k largest entries per row; duplicate-safe first-occurrence
    masking (matches torch.topk).  k is static and small."""
    iota = jax.lax.broadcasted_iota(jnp.int32, pos_sim.shape, 1)
    vals = pos_sim
    tk = jnp.zeros(pos_sim.shape[:-1] + (1,), jnp.float32)
    for _ in range(k):
        m = jnp.max(vals, axis=-1, keepdims=True)
        first = jnp.min(jnp.where(vals == m, iota, num_classes),
                        axis=-1, keepdims=True)
        tk = tk + m
        vals = jnp.where(iota == first, -jnp.inf, vals)
    return tk


# ---------------------------------------------------------------------------
# Kernels
# ---------------------------------------------------------------------------

def _rtc_kernel_int(rf_ref, te_ref, lab_ref, *rest, inv_temp, topk_param, topk_k,
                    num_classes, label_smoothing):
    """Integer labels.  Specialized to lab_sum == 1 (exact for one-hot and for
    smoothed one-hot): no lab_sum reduce, no denom, no pos_count reciprocal.
    Labels must be valid class indices in [0, num_classes) (torch's F.one_hot
    would reject anything else anyway)."""
    if len(rest) == 2:
        vm_ref, out_ref = rest
    else:
        vm_ref, out_ref = None, rest[0]

    rf = rf_ref[0].astype(jnp.float32)                     # (tR, D)
    lab_idx = lab_ref[0]                                   # (tR, 1) int32

    rf_n = _normalize_rows_bf16(rf)
    # text arrives pre-normalized bf16 and pre-transposed to (D, C):
    # one canonical MXU matmul, f32 accumulation.
    sim = jnp.dot(rf_n, te_ref[0], preferred_element_type=jnp.float32)   # (tR, C)

    col = jax.lax.broadcasted_iota(jnp.int32, sim.shape, 1)
    onehot = col == lab_idx                                # (tR, C) bool

    mx = jnp.max(sim, axis=-1, keepdims=True)
    lse = jnp.log(jnp.sum(jnp.exp((sim - mx) * inv_temp), axis=-1, keepdims=True))
    log_z = mx * inv_temp + lse                            # log softmax denominator

    if label_smoothing > 0.0:
        on_val = 1.0 - label_smoothing + label_smoothing / num_classes
        lab = jnp.where(onehot, on_val, label_smoothing / num_classes)
        pos_sim = lab * sim
        s_lab_logp = inv_temp * jnp.sum(pos_sim, axis=-1, keepdims=True) - log_z
        if topk_param > 1:
            # smoothed rows need a real top-k; denom = min(topk, 1) == 1
            pos_weight = _topk_sum(pos_sim, topk_k, num_classes)
        else:
            pos_weight = 1.0
    else:
        sim_at_label = jnp.sum(jnp.where(onehot, sim, 0.0), axis=-1, keepdims=True)
        s_lab_logp = inv_temp * sim_at_label - log_z
        if topk_param > 1:
            # strict one-hot: topk(onehot*sim, k).sum() == relu(sim_at_label)
            # for k < C (remaining top values are zeros), == sim_at_label at k == C
            pos_weight = (sim_at_label if topk_k >= num_classes
                          else jnp.maximum(sim_at_label, 0.0))
        else:
            pos_weight = 1.0

    loss = -(pos_weight * s_lab_logp)                      # pos_count == 1
    if vm_ref is not None:
        loss = loss * vm_ref[0]
    out_ref[0] = loss


def _rtc_kernel_dense(rf_ref, te_ref, lab_ref, *rest, inv_temp, topk_param, topk_k,
                      num_classes, label_smoothing):
    """Dense (multi-label / soft) labels path — keeps the general reductions."""
    if len(rest) == 2:
        vm_ref, out_ref = rest
    else:
        vm_ref, out_ref = None, rest[0]

    rf = rf_ref[0].astype(jnp.float32)                     # (tR, D)
    lab = lab_ref[0].astype(jnp.float32)                   # (tR, C)
    if label_smoothing > 0.0:
        lab = (1.0 - label_smoothing) * lab + (label_smoothing / num_classes)

    rf_n = _normalize_rows_bf16(rf)
    sim = jnp.dot(rf_n, te_ref[0], preferred_element_type=jnp.float32)   # (tR, C)

    lab_sum = jnp.sum(lab, axis=-1, keepdims=True)
    p_lab_sim = jnp.sum(lab * sim, axis=-1, keepdims=True)
    mx = jnp.max(sim, axis=-1, keepdims=True)
    lse = jnp.log(jnp.sum(jnp.exp((sim - mx) * inv_temp), axis=-1, keepdims=True))
    s_lab_logp = inv_temp * p_lab_sim - (mx * inv_temp + lse) * lab_sum

    if topk_param > 1:
        tk_sum = _topk_sum(lab * sim, topk_k, num_classes)
        denom = jnp.minimum(float(topk_param), jnp.maximum(lab_sum, 1.0))
        pos_weight = tk_sum * pl.reciprocal(denom, approx=True)
    else:
        pos_weight = 1.0

    inv_pos_count = pl.reciprocal(jnp.maximum(lab_sum, 1.0), approx=True)
    loss = -(pos_weight * s_lab_logp) * inv_pos_count
    if vm_ref is not None:
        loss = loss * vm_ref[0]
    out_ref[0] = loss


# ---------------------------------------------------------------------------
# Wrapper helpers
# ---------------------------------------------------------------------------

def _vmem_limits():
    """(physical_vmem, scoped_vmem_limit) — generation-aware.
    v5e/v6e (128 MiB) -> 64 MiB scoped limit; v7x (64 MiB) -> 40 MiB."""
    phys = 64 * 1024 * 1024                      # conservative default (v7x)
    try:
        info = pltpu.get_tpu_info()
        for attr in ("vmem_capacity_bytes", "vmem_bytes", "vmem_size_bytes"):
            v = getattr(info, attr, None)
            if v:
                phys = int(v)
                break
    except Exception:                            # API drift / no device: stay safe
        pass
    limit = 64 * 1024 * 1024 if phys >= 96 * 1024 * 1024 else 40 * 1024 * 1024
    return phys, limit


def _round_down(x, m):
    return (x // m) * m


def _pick_block_r(R, C, D, *, rf_itemsize, dense_labels, lab_itemsize,
                  has_mask, vmem_limit, requested=None):
    """Region rows per grid step: the largest tile whose double-buffered inputs
    + resident text + in-kernel row intermediates fit ~60% of the scoped VMEM
    limit, rounded to fill the MXU M dimension."""
    if requested is not None:
        tr = int(requested)
    else:
        c_pad = max(-(-C // 128) * 128, 128)           # lane padding of the C axis
        lane_col = 2 * 128 * 4                         # lane-padded (tR,1) double-buffer
        per_row = 2 * D * rf_itemsize                  # region features (double-buffered)
        per_row += 2 * c_pad * lab_itemsize if dense_labels else lane_col   # labels
        per_row += lane_col if has_mask else 0         # valid mask
        per_row += lane_col                            # loss output block
        per_row += 6 * D                               # f32 + bf16 feature copies
        per_row += 6 * c_pad * 4                       # sim + (tR, C) intermediates
        fixed = 2 * D * c_pad * 2                      # resident bf16 text (dbl-buffered)
        budget = max(int(vmem_limit * 0.6) - fixed, 2 * 1024 * 1024)
        tr = budget // per_row
    if tr >= R:
        return int(R)           # single block (block dim == full array dim is legal)
    tr = max(8, int(tr))
    if tr >= 256:
        tr = _round_down(tr, 256)    # fill the 256-wide MXU M dim (128-aligned for v5e too)
    elif tr >= 128:
        tr = _round_down(tr, 128)
    else:
        tr = max(8, _round_down(tr, 8))
    return int(tr)


# ---------------------------------------------------------------------------
# Wrapper
# ---------------------------------------------------------------------------

def region_text_contrastive_loss(region_features, text_embeddings, region_labels,
                                 valid_mask=None, *, temperature=0.1,
                                 reduction="mean", topk=3, label_smoothing=0.0,
                                 block_r=None):
    B, R, D = region_features.shape
    C = int(text_embeddings.shape[1])
    dense_labels = region_labels.ndim == 3
    has_mask = valid_mask is not None

    # Text: normalize ONCE in f32 (hoisted out of the grid loop), cast bf16,
    # pre-transpose to (B, D, C) so the kernel matmul is canonical (tR,D)@(D,C).
    te32 = text_embeddings.astype(jnp.float32)
    te_n = te32 * jax.lax.rsqrt(
        jnp.maximum(jnp.sum(te32 * te32, axis=-1, keepdims=True), 1e-24))
    te_t = jnp.swapaxes(te_n.astype(jnp.bfloat16), 1, 2)            # (B, D, C)

    rf = region_features                         # streamed in native dtype

    if dense_labels:
        lab = region_labels
        lab_cols = C
        lab_itemsize = jnp.dtype(lab.dtype).itemsize
    else:
        lab = region_labels.astype(jnp.int32)[..., None]            # (B, R, 1)
        lab_cols = 1
        lab_itemsize = 4

    _, vmem_limit = _vmem_limits()
    tR = _pick_block_r(R, C, D, rf_itemsize=jnp.dtype(rf.dtype).itemsize,
                       dense_labels=dense_labels, lab_itemsize=lab_itemsize,
                       has_mask=has_mask, vmem_limit=vmem_limit, requested=block_r)
    nR = pl.cdiv(R, tR)          # ragged last block: no jnp.pad HBM copy

    common = dict(inv_temp=float(1.0 / temperature), topk_param=int(topk),
                  topk_k=min(int(topk), C), num_classes=C,
                  label_smoothing=float(label_smoothing))
    kernel = functools.partial(
        _rtc_kernel_dense if dense_labels else _rtc_kernel_int, **common)

    in_specs = [
        pl.BlockSpec((1, tR, D), lambda b, r: (b, r, 0)),           # region features
        # TODO(synk): pipeline_mode=pl.Buffered(1) would reclaim one text buffer on
        # v7x (block index is constant over r); kept default until validated.
        pl.BlockSpec((1, D, C), lambda b, r: (b, 0, 0)),            # text (resident over R)
        pl.BlockSpec((1, tR, lab_cols), lambda b, r: (b, r, 0)),    # labels
    ]
    inputs = [rf, te_t, lab]
    if has_mask:                                 # no ones-mask DMA in the no-mask case
        in_specs.append(pl.BlockSpec((1, tR, 1), lambda b, r: (b, r, 0)))
        inputs.append(valid_mask.astype(jnp.float32)[..., None])

    bytes_in = sum(int(x.size) * jnp.dtype(x.dtype).itemsize for x in inputs)
    cost = pl.CostEstimate(flops=int(2 * B * R * C * D + 4 * B * R * D),
                           transcendentals=int(B * R * C + 2 * B * R),
                           bytes_accessed=int(bytes_in + B * R * 4))

    # TODO(synk): lane-densify the (tR,1) loss store (emit (1,1,tR) lane-major blocks)
    # once the sublane-1 output layout is validated on all generations; the output is
    # <0.1% of HBM traffic so only the store-slot cost is at stake.
    loss3 = pl.pallas_call(
        kernel,
        out_shape=jax.ShapeDtypeStruct((B, R, 1), jnp.float32),
        grid_spec=pltpu.PrefetchScalarGridSpec(
            num_scalar_prefetch=0,
            grid=(B, nR),
            in_specs=in_specs,
            out_specs=pl.BlockSpec((1, tR, 1), lambda b, r: (b, r, 0)),
        ),
        compiler_params=pltpu.CompilerParams(
            dimension_semantics=("parallel", "parallel"),
            vmem_limit_bytes=int(vmem_limit)),
        cost_estimate=cost,
    )(*inputs)

    loss_r = loss3[..., 0]                       # (B, R)

    if reduction == "mean":
        # torch: loss.sum() / valid_mask.expand_as(loss).sum() == sum / (sum(vm) * C)
        # (the max(.., 1) guard only differs from torch when no region is valid)
        if has_mask:
            denom = jnp.maximum(jnp.sum(valid_mask.astype(jnp.float32)) * C, 1.0)
        else:
            denom = float(B * R * C)
        return jnp.sum(loss_r) / denom
    elif reduction == "sum":
        return jnp.sum(loss_r)
    return loss_r


# ---------------------------------------------------------------------------
# Pure-JAX reference (mirrors the PyTorch forward; the matmul is bf16-in /
# f32-acc to match the kernel's MXU precision choice, and torch's
# `min(topk, labels_sum.clamp(min=1))` is read elementwise).
# ---------------------------------------------------------------------------

def _reference(region_features, text_embeddings, region_labels, valid_mask=None,
               temperature=0.1, reduction="mean", topk=3, label_smoothing=0.0):
    B, R, D = region_features.shape
    C = text_embeddings.shape[1]
    rf = region_features.astype(jnp.float32)
    te = text_embeddings.astype(jnp.float32)
    rf = rf * jax.lax.rsqrt(jnp.maximum(jnp.sum(rf * rf, -1, keepdims=True), 1e-24))
    te = te * jax.lax.rsqrt(jnp.maximum(jnp.sum(te * te, -1, keepdims=True), 1e-24))
    sim = jnp.einsum("brd,bcd->brc", rf.astype(jnp.bfloat16), te.astype(jnp.bfloat16),
                     preferred_element_type=jnp.float32)
    logits = sim / temperature
    if region_labels.ndim == 2:
        labels_oh = jax.nn.one_hot(region_labels, C, dtype=jnp.float32)
    else:
        labels_oh = region_labels.astype(jnp.float32)
    if label_smoothing > 0:
        labels_oh = (1 - label_smoothing) * labels_oh + label_smoothing / C
    vm = (jnp.ones((B, R), jnp.float32) if valid_mask is None
          else valid_mask.astype(jnp.float32))
    lab_sum = labels_oh.sum(-1)
    if topk > 1:
        pos_sim = sim * labels_oh
        tkv, _ = jax.lax.top_k(pos_sim, min(topk, C))
        denom = jnp.minimum(float(topk), jnp.maximum(lab_sum, 1.0))
        pos_weight = tkv.sum(-1) / denom
        weighted = labels_oh * pos_weight[..., None]
    else:
        weighted = labels_oh
    log_probs = jax.nn.log_softmax(logits, axis=-1)
    loss = -(weighted * log_probs) * vm[..., None]
    pos_count = jnp.maximum(lab_sum, 1.0)
    loss = loss.sum(-1) / pos_count
    if reduction == "mean":
        return loss.sum() / (vm.sum() * C)
    elif reduction == "sum":
        return loss.sum()
    return loss


# ---------------------------------------------------------------------------
# Self-test
# ---------------------------------------------------------------------------

if __name__ == "__main__":
    key = jax.random.PRNGKey(0)
    k1, k2, k3, k4, k5, k6, k7 = jax.random.split(key, 7)

    B, R, C, D = 2, 16, 8, 32
    rf = jax.random.normal(k1, (B, R, D), dtype=jnp.float32)
    te = jax.random.normal(k2, (B, C, D), dtype=jnp.float32)
    labels = jax.random.randint(k3, (B, R), 0, C)
    vm = jax.random.bernoulli(k4, 0.8, (B, R))
    vm = vm.at[0, 0].set(True)   # ensure at least one valid region

    def check(name, out, ref, rtol=1e-3, atol=1e-5):
        out = jax.block_until_ready(out)
        assert jnp.allclose(out, ref, rtol=rtol, atol=atol), (name, out, ref)

    # 1) fast path: int labels, no smoothing, mean reduction, tiled R (2 tiles).
    out = region_text_contrastive_loss(rf, te, labels, vm, temperature=0.1,
                                       reduction="mean", topk=3, block_r=8)
    ref = _reference(rf, te, labels, vm, temperature=0.1, reduction="mean", topk=3)
    check("fast_mean", out, ref)

    # 2) int labels + label smoothing (general top-k loop), sum reduction.
    out = region_text_contrastive_loss(rf, te, labels, vm, temperature=0.1,
                                       reduction="sum", topk=3, label_smoothing=0.1)
    ref = _reference(rf, te, labels, vm, temperature=0.1, reduction="sum", topk=3,
                     label_smoothing=0.1)
    check("smooth_sum", out, ref)

    # 3) dense multi-label path, 'none' reduction, ragged last block (R=20, tR=8).
    #    (looser tolerance: the dense path uses approx reciprocals on the EUP)
    R2 = 20
    rf2 = jax.random.normal(k5, (B, R2, D), dtype=jnp.float32)
    labels_dense = jax.random.bernoulli(k6, 0.3, (B, R2, C)).astype(jnp.float32)
    vm2 = jax.random.bernoulli(k7, 0.8, (B, R2))
    out = region_text_contrastive_loss(rf2, te, labels_dense, vm2, temperature=0.1,
                                       reduction="none", topk=3, block_r=8)
    ref = _reference(rf2, te, labels_dense, vm2, temperature=0.1,
                     reduction="none", topk=3)
    check("dense_none", out, ref, rtol=1e-2, atol=1e-3)

    # 4) topk <= 1 branch.
    out = region_text_contrastive_loss(rf, te, labels, vm, temperature=0.07,
                                       reduction="mean", topk=1)
    ref = _reference(rf, te, labels, vm, temperature=0.07, reduction="mean", topk=1)
    check("topk1_mean", out, ref)

    # 5) no valid_mask: exercises the mask-free kernel variant.
    out = region_text_contrastive_loss(rf, te, labels, None, temperature=0.1,
                                       reduction="mean", topk=3)
    ref = _reference(rf, te, labels, None, temperature=0.1, reduction="mean", topk=3)
    check("nomask_mean", out, ref)

    print("KERNEL_OK")
</pallas_src>

<mosaic_0001>
module attributes {stable_mosaic.version = 11 : i64} {
  func.func @_rtc_kernel_int(%arg0: i32, %arg1: i32, %arg2: memref<1x8x32xf32, #tpu.memory_space<vmem>>, %arg3: memref<1x32x8xbf16, #tpu.memory_space<vmem>>, %arg4: memref<1x8x1xi32, #tpu.memory_space<vmem>>, %arg5: memref<1x8x1xf32, #tpu.memory_space<vmem>>, %arg6: memref<1x8x1xf32, #tpu.memory_space<vmem>>) attributes {dimension_semantics = [#tpu.dimension_semantics<parallel>, #tpu.dimension_semantics<parallel>], iteration_bounds = array<i64: 2, 2>, scalar_prefetch = 0 : i64, scratch_operands = 0 : i64, tpu.core_type = #tpu.core_type<tc>, window_params = [{transform_indices = @transform_0, window_bounds = array<i64: 1, 8, 32>}, {transform_indices = @transform_1, window_bounds = array<i64: 1, 32, 8>}, {transform_indices = @transform_2, window_bounds = array<i64: 1, 8, 1>}, {transform_indices = @transform_3, window_bounds = array<i64: 1, 8, 1>}, {transform_indices = @transform_4, window_bounds = array<i64: 1, 8, 1>}]} {
    %c0 = arith.constant 0 : index
    %c0_0 = arith.constant 0 : index
    %c0_1 = arith.constant 0 : index
    %0 = vector.load %arg2[%c0, %c0_0, %c0_1] : memref<1x8x32xf32, #tpu.memory_space<vmem>>, vector<1x8x32xf32>
    %1 = vector.shape_cast %0 : vector<1x8x32xf32> to vector<8x32xf32>
    %c0_2 = arith.constant 0 : index
    %c0_3 = arith.constant 0 : index
    %c0_4 = arith.constant 0 : index
    %2 = vector.load %arg4[%c0_2, %c0_3, %c0_4] : memref<1x8x1xi32, #tpu.memory_space<vmem>>, vector<1x8x1xi32>
    %3 = vector.shape_cast %2 : vector<1x8x1xi32> to vector<8x1xi32>
    %4 = arith.mulf %1, %1 : vector<8x32xf32>
    %cst = arith.constant dense<0.000000e+00> : vector<8xf32>
    %5 = vector.multi_reduction <add>, %4, %cst [1] : vector<8x32xf32> to vector<8xf32>
    %6 = vector.shape_cast %5 : vector<8xf32> to vector<8x1xf32>
    %cst_5 = arith.constant 1.000000e-24 : f32
    %7 = vector.broadcast %cst_5 : f32 to vector<8x1xf32>
    %8 = arith.maximumf %6, %7 : vector<8x1xf32>
    %9 = math.rsqrt %8 : vector<8x1xf32>
    %10 = vector.broadcast %9 : vector<8x1xf32> to vector<8x32xf32>
    %11 = arith.mulf %1, %10 : vector<8x32xf32>
    %12 = arith.truncf %11 : vector<8x32xf32> to vector<8x32xbf16>
    %c0_6 = arith.constant 0 : index
    %c0_7 = arith.constant 0 : index
    %c0_8 = arith.constant 0 : index
    %13 = vector.load %arg3[%c0_6, %c0_7, %c0_8] : memref<1x32x8xbf16, #tpu.memory_space<vmem>>, vector<1x32x8xbf16>
    %14 = vector.shape_cast %13 : vector<1x32x8xbf16> to vector<32x8xbf16>
    %cst_9 = arith.constant dense<0.000000e+00> : vector<8x8xf32>
    %15 = tpu.matmul %12, %14, %cst_9 {dimension_numbers = #tpu.dot_dimension_numbers<[1], [0], [0], [1], [0, 0, 1, 1], [], []>} : vector<8x32xbf16>, vector<32x8xbf16>, vector<8x8xf32> -> vector<8x8xf32>
    %16 = tpu.iota {dimensions = array<i32: 1>} : vector<8x8xi32>
    %17 = vector.broadcast %3 : vector<8x1xi32> to vector<8x8xi32>
    %18 = arith.cmpi eq, %16, %17 : vector<8x8xi32>
    %cst_10 = arith.constant dense<0xFF800000> : vector<8xf32>
    %19 = vector.multi_reduction <maximumf>, %15, %cst_10 [1] : vector<8x8xf32> to vector<8xf32>
    %20 = vector.shape_cast %19 : vector<8xf32> to vector<8x1xf32>
    %21 = vector.broadcast %20 : vector<8x1xf32> to vector<8x8xf32>
    %22 = arith.subf %15, %21 : vector<8x8xf32>
    %cst_11 = arith.constant 1.000000e+01 : f32
    %23 = vector.broadcast %cst_11 : f32 to vector<8x8xf32>
    %24 = arith.mulf %22, %23 : vector<8x8xf32>
    %25 = math.exp %24 : vector<8x8xf32>
    %cst_12 = arith.constant dense<0.000000e+00> : vector<8xf32>
    %26 = vector.multi_reduction <add>, %25, %cst_12 [1] : vector<8x8xf32> to vector<8xf32>
    %27 = vector.shape_cast %26 : vector<8xf32> to vector<8x1xf32>
    %28 = math.log %27 : vector<8x1xf32>
    %cst_13 = arith.constant 1.000000e+01 : f32
    %29 = vector.broadcast %cst_13 : f32 to vector<8x1xf32>
    %30 = arith.mulf %20, %29 : vector<8x1xf32>
    %31 = arith.addf %30, %28 : vector<8x1xf32>
    %cst_14 = arith.constant 0.000000e+00 : f32
    %32 = vector.broadcast %cst_14 : f32 to vector<8x8xf32>
    %33 = arith.select %18, %15, %32 : vector<8x8xi1>, vector<8x8xf32>
    %cst_15 = arith.constant dense<0.000000e+00> : vector<8xf32>
    %34 = vector.multi_reduction <add>, %33, %cst_15 [1] : vector<8x8xf32> to vector<8xf32>
    %35 = vector.shape_cast %34 : vector<8xf32> to vector<8x1xf32>
    %cst_16 = arith.constant 1.000000e+01 : f32
    %36 = vector.broadcast %cst_16 : f32 to vector<8x1xf32>
    %37 = arith.mulf %36, %35 : vector<8x1xf32>
    %38 = arith.subf %37, %31 : vector<8x1xf32>
    %cst_17 = arith.constant 0.000000e+00 : f32
    %39 = vector.broadcast %cst_17 : f32 to vector<8x1xf32>
    %40 = arith.maximumf %35, %39 : vector<8x1xf32>
    %41 = arith.mulf %40, %38 : vector<8x1xf32>
    %cst_18 = arith.constant 0.000000e+00 : f32
    %42 = vector.broadcast %cst_18 : f32 to vector<8x1xf32>
    %43 = arith.subf %42, %41 : vector<8x1xf32>
    %c0_19 = arith.constant 0 : index
    %c0_20 = arith.constant 0 : index
    %c0_21 = arith.constant 0 : index
    %44 = vector.load %arg5[%c0_19, %c0_20, %c0_21] : memref<1x8x1xf32, #tpu.memory_space<vmem>>, vector<1x8x1xf32>
    %45 = vector.shape_cast %44 : vector<1x8x1xf32> to vector<8x1xf32>
    %46 = arith.mulf %43, %45 : vector<8x1xf32>
    %c0_22 = arith.constant 0 : index
    %c0_23 = arith.constant 0 : index
    %c0_24 = arith.constant 0 : index
    %47 = vector.load %arg6[%c0_22, %c0_23, %c0_24] : memref<1x8x1xf32, #tpu.memory_space<vmem>>, vector<1x8x1xf32>
    %48 = vector.shape_cast %47 : vector<1x8x1xf32> to vector<8x1xf32>
    %49 = vector.shape_cast %46 : vector<8x1xf32> to vector<1x8x1xf32>
    tpu.vector_store %arg6[%c0_22, %c0_23, %c0_24], %49 {strides = array<i32>} : memref<1x8x1xf32, #tpu.memory_space<vmem>>, vector<1x8x1xf32>,
    return
  }
  func.func @transform_0(%arg0: i32, %arg1: i32) -> (i32, i32, i32) {
    %c0_i32 = arith.constant 0 : i32
    %c0_i32_0 = arith.constant 0 : i32
    return %arg0, %arg1, %c0_i32 : i32, i32, i32
  }
  func.func @transform_1(%arg0: i32, %arg1: i32) -> (i32, i32, i32) {
    %c0_i32 = arith.constant 0 : i32
    %c0_i32_0 = arith.constant 0 : i32
    %c0_i32_1 = arith.constant 0 : i32
    return %arg0, %c0_i32, %c0_i32_0 : i32, i32, i32
  }
  func.func @transform_2(%arg0: i32, %arg1: i32) -> (i32, i32, i32) {
    %c0_i32 = arith.constant 0 : i32
    %c0_i32_0 = arith.constant 0 : i32
    return %arg0, %arg1, %c0_i32 : i32, i32, i32
  }
  func.func @transform_3(%arg0: i32, %arg1: i32) -> (i32, i32, i32) {
    %c0_i32 = arith.constant 0 : i32
    %c0_i32_0 = arith.constant 0 : i32
    return %arg0, %arg1, %c0_i32 : i32, i32, i32
  }
  func.func @transform_4(%arg0: i32, %arg1: i32) -> (i32, i32, i32) {
    %c0_i32 = arith.constant 0 : i32
    %c0_i32_0 = arith.constant 0 : i32
    return %arg0, %arg1, %c0_i32 : i32, i32, i32
  }
}

</mosaic_0001>

<llo_original>
// kernel: tpu_custom_call.1
$region0: #{tpu_custom_call.1}
  #allocation0 [shape = 'u32[]', space=smem, size = 0x4, offset = 0x4, fixed_abs, tag = 'smem constant byte address 0x4 - core index']
  #allocation1 [shape = 'u32[72,128]{1,0:T(1,128)}', space=vmem, size = 0x9000, scoped, tag = 'internal scratch']
  %s0 = inlined_call_operand.vmem [shape: f32[2,16,32], index: 0, kind: input, shape index: {}]
  %s1 = inlined_call_operand.vmem [shape: bf16[2,32,8], index: 1, kind: input, shape index: {}]
  %s2 = inlined_call_operand.vmem [shape: s32[2,16,1], index: 2, kind: input, shape index: {}]
  %s3 = inlined_call_operand.vmem [shape: f32[2,16,1], index: 3, kind: input, shape index: {}]
  %s4 = inlined_call_operand.vmem [shape: f32[2,16,1], index: 4, kind: output, shape index: {}]
  %s5 = sld [smem:[#allocation0]]
  $region49: #{tpu_custom_call.1} parent=0
    _
  %s7 = ssub.s32 1, %s5
  %s8 = scalar_select 0, %s7, %s5
  loop: start=0, step=1, limit=6
  $region2: #{tpu_custom_call.1} parent=0 // loop_pre_header
    _
  $region3: #{tpu_custom_call.1} parent=0 // loop_header
    %s10 = sphi 0, %s14
    %p11 = scmp.ge.s32.totalorder %s10, 6
    %s17 = sphi 0, %s29
    %s18 = sphi 0, %s25
    %s19 = sphi 0, %s17
    %s20 = sphi 0, %s18
    %s21 = sphi 0, %s19
    %s22 = sphi 0, %s20
    %s34 = sphi 0, %s36
    %s37 = sphi 0, %s34
    %s38 = sphi 0, %s37
    %s54 = sphi 0, %s38
    %s60 = sphi 0, %s62
    %s63 = sphi 0, %s60
    %s64 = sphi 0, %s63
    %s80 = sphi 0, %s64
    %s88 = sphi 0, %s90
    %s91 = sphi 0, %s88
    %s92 = sphi 0, %s91
    %s108 = sphi 0, %s92
    %s116 = sphi 0, %s118
    %s119 = sphi 0, %s116
    %s120 = sphi 0, %s119
    %s136 = sphi 0, %s120
    %s144 = sphi 0, %s146
    %s147 = sphi 0, %s144
    %s148 = sphi 0, %s147
    %s164 = sphi 0, %s148
  $region4: #{tpu_custom_call.1} parent=0 // loop_header_branch
    %13 = sbr.rel (%p11) target = $region8
  $region5: #{tpu_custom_call.1} parent=0 // loop_body
    %s15 = ssub.s32 %s10, 1
    %s16 = ssub.s32 %s10, 2
    %s23 = sadd.s32 1, %s18
    %p24 = scmp.ge.s32.totalorder %s23, 2
    %s25 = scalar_select %p24, 0, %s23
    %s26 = sadd.s32 1, %s17
    %s27 = scalar_select %p24, %s26, %s17
    %p28 = scmp.ge.s32.totalorder %s27, 2
    %s29 = scalar_select %p28, 0, %s27
    %s30 = ssub.s32 %s17, %s29
    %s31 = ssub.s32 %s18, %s25
    %s32 = sor.u32 %s30, %s31
    %p33 = scmp.eq.s32.totalorder %s32, 0
    %s35 = sadd.s32 %s34, 1
    %s36 = scalar_select %p33, %s34, %s35
    %p39 = pneg %p33
    %p40 = scmp.eq.s32.totalorder %s10, 3
    %p41 = por %p39, %p40
    %p42 = scmp.ne.s32.totalorder %s34, %s37
    %p43 = scmp.eq.s32.totalorder %s10, 0
    %p44 = por %p42, %p43
    %p45 = scmp.ne.s32.totalorder %s34, %s37
    %p46 = scmp.eq.s32.totalorder %s15, 3
    %p47 = por %p45, %p46
    %p48 = scmp.ne.s32.totalorder %s37, %s38
    %p49 = scmp.eq.s32.totalorder %s15, 0
    %p50 = por %p48, %p49
    %p51 = scmp.ne.s32.totalorder %s37, %s38
    %p52 = scmp.eq.s32.totalorder %s16, 3
    %p53 = por %p51, %p52
    %p55 = scmp.ne.s32.totalorder %s38, %s54
    %p56 = scmp.eq.s32.totalorder %s16, 0
    %p57 = por %p55, %p56
    %s58 = ssub.s32 %s17, %s29
    %p59 = scmp.eq.s32.totalorder %s58, 0
    %s61 = sadd.s32 %s60, 1
    %s62 = scalar_select %p59, %s60, %s61
    %p65 = pneg %p59
    %p66 = scmp.eq.s32.totalorder %s10, 3
    %p67 = por %p65, %p66
    %p68 = scmp.ne.s32.totalorder %s60, %s63
    %p69 = scmp.eq.s32.totalorder %s10, 0
    %p70 = por %p68, %p69
    %p71 = scmp.ne.s32.totalorder %s60, %s63
    %p72 = scmp.eq.s32.totalorder %s15, 3
    %p73 = por %p71, %p72
    %p74 = scmp.ne.s32.totalorder %s63, %s64
    %p75 = scmp.eq.s32.totalorder %s15, 0
    %p76 = por %p74, %p75
    %p77 = scmp.ne.s32.totalorder %s63, %s64
    %p78 = scmp.eq.s32.totalorder %s16, 3
    %p79 = por %p77, %p78
    %p81 = scmp.ne.s32.totalorder %s64, %s80
    %p82 = scmp.eq.s32.totalorder %s16, 0
    %p83 = por %p81, %p82
    %s84 = ssub.s32 %s17, %s29
    %s85 = ssub.s32 %s18, %s25
    %s86 = sor.u32 %s84, %s85
    %p87 = scmp.eq.s32.totalorder %s86, 0
    %s89 = sadd.s32 %s88, 1
    %s90 = scalar_select %p87, %s88, %s89
    %p93 = pneg %p87
    %p94 = scmp.eq.s32.totalorder %s10, 3
    %p95 = por %p93, %p94
    %p96 = scmp.ne.s32.totalorder %s88, %s91
    %p97 = scmp.eq.s32.totalorder %s10, 0
    %p98 = por %p96, %p97
    %p99 = scmp.ne.s32.totalorder %s88, %s91
    %p100 = scmp.eq.s32.totalorder %s15, 3
    %p101 = por %p99, %p100
    %p102 = scmp.ne.s32.totalorder %s91, %s92
    %p103 = scmp.eq.s32.totalorder %s15, 0
    %p104 = por %p102, %p103
    %p105 = scmp.ne.s32.totalorder %s91, %s92
    %p106 = scmp.eq.s32.totalorder %s16, 3
    %p107 = por %p105, %p106
    %p109 = scmp.ne.s32.totalorder %s92, %s108
    %p110 = scmp.eq.s32.totalorder %s16, 0
    %p111 = por %p109, %p110
    %s112 = ssub.s32 %s17, %s29
    %s113 = ssub.s32 %s18, %s25
    %s114 = sor.u32 %s112, %s113
    %p115 = scmp.eq.s32.totalorder %s114, 0
    %s117 = sadd.s32 %s116, 1
    %s118 = scalar_select %p115, %s116, %s117
    %p121 = pneg %p115
    %p122 = scmp.eq.s32.totalorder %s10, 3
    %p123 = por %p121, %p122
    %p124 = scmp.ne.s32.totalorder %s116, %s119
    %p125 = scmp.eq.s32.totalorder %s10, 0
    %p126 = por %p124, %p125
    %p127 = scmp.ne.s32.totalorder %s116, %s119
    %p128 = scmp.eq.s32.totalorder %s15, 3
    %p129 = por %p127, %p128
    %p130 = scmp.ne.s32.totalorder %s119, %s120
    %p131 = scmp.eq.s32.totalorder %s15, 0
    %p132 = por %p130, %p131
    %p133 = scmp.ne.s32.totalorder %s119, %s120
    %p134 = scmp.eq.s32.totalorder %s16, 3
    %p135 = por %p133, %p134
    %p137 = scmp.ne.s32.totalorder %s120, %s136
    %p138 = scmp.eq.s32.totalorder %s16, 0
    %p139 = por %p137, %p138
    %s140 = ssub.s32 %s17, %s29
    %s141 = ssub.s32 %s18, %s25
    %s142 = sor.u32 %s140, %s141
    %p143 = scmp.eq.s32.totalorder %s142, 0
    %s145 = sadd.s32 %s144, 1
    %s146 = scalar_select %p143, %s144, %s145
    %p149 = pneg %p143
    %p150 = scmp.eq.s32.totalorder %s10, 3
    %p151 = por %p149, %p150
    %p152 = scmp.ne.s32.totalorder %s144, %s147
    %p153 = scmp.eq.s32.totalorder %s10, 0
    %p154 = por %p152, %p153
    %p155 = scmp.ne.s32.totalorder %s144, %s147
    %p156 = scmp.eq.s32.totalorder %s15, 3
    %p157 = por %p155, %p156
    %p158 = scmp.ne.s32.totalorder %s147, %s148
    %p159 = scmp.eq.s32.totalorder %s15, 0
    %p160 = por %p158, %p159
    %p161 = scmp.ne.s32.totalorder %s147, %s148
    %p162 = scmp.eq.s32.totalorder %s16, 3
    %p163 = por %p161, %p162
    %p165 = scmp.ne.s32.totalorder %s148, %s164
    %p166 = scmp.eq.s32.totalorder %s16, 0
    %p167 = por %p165, %p166
    %p168 = scmp.le.s32.totalorder 1, %s10
    %p169 = scmp.lt.s32.totalorder %s10, 5
    %p170 = pnand %p168, %p169
    %p171 = pneg %p170
    // Predicated region
    $region9: #{tpu_custom_call.1} parent=5 // pred_check
      _
    $region10: #{tpu_custom_call.1} parent=5 // pred_check_branch
      %173 = sbr.rel (%p170) target = $region12
    $region11: #{tpu_custom_call.1} parent=5 // pred_region
      %s174 = ssub.s32 %s10, 1
    $region12: #{tpu_custom_call.1} parent=5 // pred_fallthru
      _
    %p175 = scmp.lt.s32.totalorder %s10, 4
    // Predicated region
    $region13: #{tpu_custom_call.1} parent=5 // pred_check
      %p176 = pneg %p175
    $region14: #{tpu_custom_call.1} parent=5 // pred_check_branch
      %178 = sbr.rel (%p176) target = $region16
    $region15: #{tpu_custom_call.1} parent=5 // pred_region
      // Predicated region
      $region17: #{tpu_custom_call.1} parent=15 // pred_check
        %p179 = pneg %p44
      $region18: #{tpu_custom_call.1} parent=15 // pred_check_branch
        %181 = sbr.rel (%p179) target = $region20
      $region19: #{tpu_custom_call.1} parent=15 // pred_region
        %p182 = scmp.lt.s32.totalorder %s17, 1
        %s183 = scalar_select %p182, %s17, 1
        %p184 = scmp.lt.s32.totalorder %s18, 1
        %s185 = scalar_select %p184, %s18, 1
        %s186 = smul.addr %s183, 2
        %s187 = sadd.s32 %s185, %s186
        %s188 = smul.addr %s187, 8
        %s189 = scalar_lea.vmem %s0, %s188
      $region20: #{tpu_custom_call.1} parent=15 // pred_fallthru
        _
      // Predicated region
      $region21: #{tpu_custom_call.1} parent=15 // pred_check
        %p190 = pneg %p70
      $region22: #{tpu_custom_call.1} parent=15 // pred_check_branch
        %192 = sbr.rel (%p190) target = $region24
      $region23: #{tpu_custom_call.1} parent=15 // pred_region
        %p193 = scmp.lt.s32.totalorder %s17, 1
        %s194 = scalar_select %p193, %s17, 1
        %s195 = smul.addr %s194, 4
        %s196 = smul.addr %s195, 4
        %s197 = scalar_lea.vmem %s1, %s196
      $region24: #{tpu_custom_call.1} parent=15 // pred_fallthru
        _
      // Predicated region
      $region25: #{tpu_custom_call.1} parent=15 // pred_check
        %p198 = pneg %p98
      $region26: #{tpu_custom_call.1} parent=15 // pred_check_branch
        %200 = sbr.rel (%p198) target = $region28
      $region27: #{tpu_custom_call.1} parent=15 // pred_region
        %p201 = scmp.lt.s32.totalorder %s17, 1
        %s202 = scalar_select %p201, %s17, 1
        %p203 = scmp.lt.s32.totalorder %s18, 1
        %s204 = scalar_select %p203, %s18, 1
        %s205 = smul.addr %s202, 2
        %s206 = sadd.s32 %s204, %s205
        %s207 = smul.addr %s206, 8
        %s208 = scalar_lea.vmem %s2, %s207
      $region28: #{tpu_custom_call.1} parent=15 // pred_fallthru
        _
      // Predicated region
      $region29: #{tpu_custom_call.1} parent=15 // pred_check
        %p209 = pneg %p126
      $region30: #{tpu_custom_call.1} parent=15 // pred_check_branch
        %211 = sbr.rel (%p209) target = $region32
      $region31: #{tpu_custom_call.1} parent=15 // pred_region
        %p212 = scmp.lt.s32.totalorder %s17, 1
        %s213 = scalar_select %p212, %s17, 1
        %p214 = scmp.lt.s32.totalorder %s18, 1
        %s215 = scalar_select %p214, %s18, 1
        %s216 = smul.addr %s213, 2
        %s217 = sadd.s32 %s215, %s216
        %s218 = smul.addr %s217, 8
        %s219 = scalar_lea.vmem %s3, %s218
      $region32: #{tpu_custom_call.1} parent=15 // pred_fallthru
        _
    $region16: #{tpu_custom_call.1} parent=5 // pred_fallthru
      _
    %p220 = scmp.le.s32.totalorder 1, %s10
    %p221 = scmp.lt.s32.totalorder %s10, 5
    %p222 = pnand %p220, %p221
    %p223 = pneg %p222
    // Predicated region
    $region33: #{tpu_custom_call.1} parent=5 // pred_check
      _
    $region34: #{tpu_custom_call.1} parent=5 // pred_check_branch
      %225 = sbr.rel (%p222) target = $region36
    $region35: #{tpu_custom_call.1} parent=5 // pred_region
      %s226 = ssub.s32 %s10, 1
      %p227 = scmp.lt.s32.totalorder %s19, 1
      %s228 = scalar_select %p227, %s19, 1
      %p229 = scmp.lt.s32.totalorder %s20, 1
      %s230 = scalar_select %p229, %s20, 1
      %s231 = smul.addr %s228, 2
      %s232 = sadd.s32 %s230, %s231
      %s233 = smul.addr %s232, 8
      %s234 = scalar_lea.vmem %s0, %s233
      %p235 = pneg %p50
      %p236 = pneg %p47
      %p237 = scmp.lt.s32.totalorder %s19, 1
      %s238 = scalar_select %p237, %s19, 1
      %s239 = smul.addr %s238, 4
      %s240 = smul.addr %s239, 4
      %s241 = scalar_lea.vmem %s1, %s240
      %p242 = pneg %p76
      %p243 = pneg %p73
      %p244 = scmp.lt.s32.totalorder %s19, 1
      %s245 = scalar_select %p244, %s19, 1
      %p246 = scmp.lt.s32.totalorder %s20, 1
      %s247 = scalar_select %p246, %s20, 1
      %s248 = smul.addr %s245, 2
      %s249 = sadd.s32 %s247, %s248
      %s250 = smul.addr %s249, 8
      %s251 = scalar_lea.vmem %s2, %s250
      %p252 = pneg %p104
      %p253 = pneg %p101
      %p254 = scmp.lt.s32.totalorder %s19, 1
      %s255 = scalar_select %p254, %s19, 1
      %p256 = scmp.lt.s32.totalorder %s20, 1
      %s257 = scalar_select %p256, %s20, 1
      %s258 = smul.addr %s255, 2
      %s259 = sadd.s32 %s257, %s258
      %s260 = smul.addr %s259, 8
      %s261 = scalar_lea.vmem %s3, %s260
      %p262 = pneg %p132
      %p263 = pneg %p129
      %p264 = pneg %p160
      %p265 = pneg %p157
      %p266 = scmp.lt.s32.totalorder %s19, 1
      %s267 = scalar_select %p266, %s19, 1
      %p268 = scmp.lt.s32.totalorder %s20, 1
      %s269 = scalar_select %p268, %s20, 1
      %s270 = smul.addr %s267, 2
      %s271 = sadd.s32 %s269, %s270
      %s272 = smul.addr %s271, 8
      %s273 = scalar_lea.vmem %s4, %s272
      %p274 = scmp.lt.s32.totalorder %s19, 1
      %s275 = scalar_select %p274, %s19, 1
      %p276 = scmp.lt.s32.totalorder %s20, 1
      %s277 = scalar_select %p276, %s20, 1
      %s278 = smul.addr %s275, 2
      %s279 = sadd.s32 %s277, %s278
      %s280 = smul.addr %s279, 8
      %s281 = scalar_lea.vmem %s0, %s280
      %p282 = scmp.lt.s32.totalorder %s19, 1
      %s283 = scalar_select %p282, %s19, 1
      %s284 = smul.addr %s283, 4
      %s285 = smul.addr %s284, 4
      %s286 = scalar_lea.vmem %s1, %s285
      %p287 = scmp.lt.s32.totalorder %s19, 1
      %s288 = scalar_select %p287, %s19, 1
      %p289 = scmp.lt.s32.totalorder %s20, 1
      %s290 = scalar_select %p289, %s20, 1
      %s291 = smul.addr %s288, 2
      %s292 = sadd.s32 %s290, %s291
      %s293 = smul.addr %s292, 8
      %s294 = scalar_lea.vmem %s2, %s293
      %p295 = scmp.lt.s32.totalorder %s19, 1
      %s296 = scalar_select %p295, %s19, 1
      %p297 = scmp.lt.s32.totalorder %s20, 1
      %s298 = scalar_select %p297, %s20, 1
      %s299 = smul.addr %s296, 2
      %s300 = sadd.s32 %s298, %s299
      %s301 = smul.addr %s300, 8
      %s302 = scalar_lea.vmem %s3, %s301
      %p303 = scmp.lt.s32.totalorder %s19, 1
      %s304 = scalar_select %p303, %s19, 1
      %p305 = scmp.lt.s32.totalorder %s20, 1
      %s306 = scalar_select %p305, %s20, 1
      %s307 = smul.addr %s304, 2
      %s308 = sadd.s32 %s306, %s307
      %s309 = smul.addr %s308, 8
      %s310 = scalar_lea.vmem %s4, %s309
      %v312 = vld [vmem:[%s281] sm:$0xff]
      %v313 = vld [vmem:[%s294] sm:$0xff]
      %v314 = vmul.f32 %v312, %v312
      %vm315 = vcmask 261120
      %v316 = vsel %vm315, %v314, 0.0
      %317 = vadd.xlane.f32.xlu0 %v316
      %v318 = vpop.xlane.xlu0 %317
      %v319 = vmax.f32 %v318, 1e-24
      %v320 = vrsqrt.pop %v319
      %v321 = vmul.f32 %v320, %v319
      %v322 = vmul.f32 %v321, %v320
      %v323 = vmul.f32 0.5, %v322
      %v324 = vsub.f32 1.5, %v323
      %v325 = vmul.f32 %v320, %v324
      %vm326 = vweird.f32 %v319
      %vm327 = vweird.f32 %v320
      %vm328 = vmor %vm326, %vm327
      %v329 = vsel %vm328, %v320, %v325
      %v330 = vmul.f32 %v312, %v329
      %v331 = vpack.c.bf16 %v330, %v330
      %v332 = vld [vmem:[%s286] sm:$0xf]
      %v333 = vld [vmem:[%s286 + $0x4] sm:$0xf]
      %v334 = vld [vmem:[%s286 + $0x8] sm:$0xf]
      %v335 = vld [vmem:[%s286 + $0xc] sm:$0xf]
      %v340 = vunpack.c.l.b16 %v332
      %v341 = vunpack.c.l.b16 %v333
      %v342 = vunpack.c.l.b16 %v334
      %v343 = vunpack.c.l.b16 %v335
      %v344 = vpack.c.b16 %v341, %v340
      %v345 = vpack.c.b16 %v343, %v342
      %v349 = vsel %vm315, %v331, 0
      %351 = vmatpush.bf16.msra.mxu0 0
      %352 = vmatpush.bf16.msra.mxu0 0
      %353 = vmatpush.bf16.msra.mxu0 0
      %354 = vmatpush.bf16.msra.mxu0 0
      %355 = vmatpush.bf16.msra.mxu0 0
      %356 = vmatpush.bf16.msra.mxu0 0
      %357 = vmatpush.bf16.msra.mxu0 %v345
      %358 = vmatpush.bf16.msra.mxu0 %v344
      %359 = vmatmul.bf16.gmra.mxu0 %v349
      %v360 = vpop.f32.mrf.mxu0
      %v361 = vadd.f32 0.0, %v360
      %v362 = vpop.f32.mrf.mxu0
      %363 = vdwg.mxu0
      %v364 = vlaneseq
      %v365 = vand.u32 %v364, 127
      %366 = vset.pattern.permute.xlu0 0
      %367 = vperm.xlu0 %366, %v313
      %v368 = vpop.permute.xlu0 %367
      %vm369 = vcmp.eq.s32.totalorder %v365, %v368
      %vm370 = vcmask 64512
      %v371 = vsel %vm370, %v361, -inf
      %372 = vmax.xlane.f32.xlu0 %v371
      %v373 = vpop.xlane.xlu0 %372
      %v374 = vsub.f32 %v361, %v373
      %v375 = vmul.f32 %v374, 10.0
      %v376 = vmul.f32 %v375, 1.442695
      %v377 = vpow.pop %v376
      %v378 = vsel %vm370, %v377, 0.0
      %379 = vadd.xlane.f32.xlu0 %v378
      %v380 = vpop.xlane.xlu0 %379
      %v381 = vlog2.pop %v380
      %v382 = vmul.f32 %v381, 0.6931472
      %v383 = vmul.f32 %v373, 10.0
      %v384 = vadd.f32 %v383, %v382
      %v385 = vsel %vm369, %v361, 0.0
      %v386 = vsel %vm370, %v385, 0.0
      %387 = vadd.xlane.f32.xlu0 %v386
      %v388 = vpop.xlane.xlu0 %387
      %v389 = vmul.f32 %v388, 10.0
      %v390 = vsub.f32 %v389, %v384
      %v391 = vmax.f32 %v388, 0.0
      %v392 = vmul.f32 %v391, %v390
      %v393 = vsub.f32 0.0, %v392
      %v394 = vld [vmem:[%s302] sm:$0xff]
      %v395 = vmul.f32 %v393, %v394
      %vm396 = vcmask 7168
      %397 = vst.msk [vmem:[%s310] sm:$0xff] %vm396, %v395
      %p398 = scmp.lt.s32.totalorder %s19, 1
      %s399 = scalar_select %p398, %s19, 1
      %p400 = scmp.lt.s32.totalorder %s20, 1
      %s401 = scalar_select %p400, %s20, 1
      %s402 = smul.addr %s399, 2
      %s403 = sadd.s32 %s401, %s402
      %s404 = smul.addr %s403, 8
      %s405 = scalar_lea.vmem %s4, %s404
      // Predicated region
      $region37: #{tpu_custom_call.1} parent=35 // pred_check
        %p406 = pneg %p157
      $region38: #{tpu_custom_call.1} parent=35 // pred_check_branch
        %408 = sbr.rel (%p406) target = $region40
      $region39: #{tpu_custom_call.1} parent=35 // pred_region
        _
      $region40: #{tpu_custom_call.1} parent=35 // pred_fallthru
        _
    $region36: #{tpu_custom_call.1} parent=5 // pred_fallthru
      _
    %p409 = scmp.le.s32.totalorder 2, %s10
    // Predicated region
    $region41: #{tpu_custom_call.1} parent=5 // pred_check
      %p410 = pneg %p409
    $region42: #{tpu_custom_call.1} parent=5 // pred_check_branch
      %412 = sbr.rel (%p410) target = $region44
    $region43: #{tpu_custom_call.1} parent=5 // pred_region
      %s413 = ssub.s32 %s10, 2
      // Predicated region
      $region45: #{tpu_custom_call.1} parent=43 // pred_check
        %p414 = pneg %p163
      $region46: #{tpu_custom_call.1} parent=43 // pred_check_branch
        %416 = sbr.rel (%p414) target = $region48
      $region47: #{tpu_custom_call.1} parent=43 // pred_region
        %p417 = scmp.lt.s32.totalorder %s21, 1
        %s418 = scalar_select %p417, %s21, 1
        %p419 = scmp.lt.s32.totalorder %s22, 1
        %s420 = scalar_select %p419, %s22, 1
        %s421 = smul.addr %s418, 2
        %s422 = sadd.s32 %s420, %s421
        %s423 = smul.addr %s422, 8
        %s424 = scalar_lea.vmem %s4, %s423
      $region48: #{tpu_custom_call.1} parent=43 // pred_fallthru
        _
    $region44: #{tpu_custom_call.1} parent=5 // pred_fallthru
      _
  $region6: #{tpu_custom_call.1} parent=0 // loop_footer
    %s14 = sadd.s32 1, %s10
  $region7: #{tpu_custom_call.1} parent=0 // loop_footer_branch
    %9 = sbr.rel target = $region3
  $region8: #{tpu_custom_call.1} parent=0 // loop_exit
    _

</llo_original>
